<compile_context>
chip_gen: v7x
topology: tpu7x:2x2x1
jax: 0.10.0
libtpu: 0.0.40
codegen_flags: <defaults>
</compile_context>

<pallas_src>
import functools
import numpy as np
import jax
import jax.numpy as jnp
from jax.experimental import pallas as pl
from jax.experimental.pallas import tpu as pltpu

_NEG = -1e30            # additive mask for rejected / padded prototype rows
_EPS = 1e-4             # safe_norm / cosine eps (matches the PyTorch module)
_MAX_TILE_HW = 2048     # upper cap; the real bound comes from the VMEM budget
_RANK_SENTINEL = 3.0e38


# ---------------------------------------------------------------------------
# helpers
# ---------------------------------------------------------------------------
def _cdiv(a, b):
    return -(-a // b)


def _round_up(x, m):
    return _cdiv(x, m) * m


def _avg_pool2d(x, k):
    kh, kw = k
    *lead, H, W = x.shape
    x = x.reshape(*lead, H // kh, kh, W // kw, kw)
    return x.mean(axis=(-3, -1))


def _vmem_capacity_bytes():
    try:
        cap = int(getattr(pltpu.get_tpu_info(), "vmem_capacity_bytes"))
        if cap > 0:
            return cap
    except Exception:
        pass
    return 64 * 1024 * 1024  # conservative fallback (v7x per-TensorCore)


def _plan_tiling(hw, c, np_pad, want_dists):
    """HW lane-tile, padded extent and shape-aware VMEM budget.

    Goals (perf review): >=2 grid steps when possible (v7x megacore, DMA overlap),
    minimal padding, tile bounded by the actual per-block VMEM footprint rather
    than a fixed cap (larger tiles on v5e/v6e, safe on v7x's 64 MiB).
    """
    cap = _vmem_capacity_bytes()
    budget = int(cap * 0.55)                        # headroom for compiler scratch

    # Bytes per lane-column during one grid step: double-buffered pipeline blocks
    # plus an upper bound on in-kernel [C,T] / [NP,T] temporaries.
    per_col = 4 * c * 2                             # qry input block (f32, 2 bufs)
    per_col += 4 * 2 * 2                            # [<=2, T] pred/assign output
    if want_dists:
        per_col += 2 * np_pad * 2                   # bf16 dists output block
    per_col += 4 * c * 2 + 2 * c                    # centred/normed qry temps + bf16 cast
    per_col += 4 * np_pad * 3                       # dists / exp / where temporaries
    const = 2 * (2 * np_pad * c + 3 * 4 * np_pad)   # resident protos + bias/rank/rsum

    if hw <= 128:
        tile, hw_pad = hw, hw                       # full-width block (grid of 1)
    else:
        avail = max(budget - const, 128 * per_col)
        max_tile = max(128, min(_MAX_TILE_HW, (avail // per_col) // 128 * 128))
        n_tiles = max(2, _cdiv(hw, max_tile))       # >=2 steps: both v7x cores busy
        tile = min(max_tile, _round_up(_cdiv(hw, n_tiles), 128))
        hw_pad = _round_up(hw, tile)

    need = const + per_col * tile
    vmem_limit = int(min(cap * 0.7, max(32 * 1024 * 1024, 2 * need)))
    return tile, hw_pad, vmem_limit


# ---------------------------------------------------------------------------
# Pallas kernels
# ---------------------------------------------------------------------------
def _gridconv_kernel(qry_ref, pron_ref, bias_ref, rank_ref, rsum_ref, *out_refs,
                     fold_qn, want_dists, want_assign):
    """gridconv / gridconv+ hot path for one HW tile.

    qry_ref : [C, T]       raw query tile (f32)
    pron_ref: [NP_pad, C]  centered + safe-normed prototypes (bf16; invalid rows 0)
    bias_ref: [NP_pad, 1]  0 for valid prototypes, -1e30 for rejected/padding rows
    rank_ref: [NP_pad, 1]  compacted prototype index (float) per valid row
    rsum_ref: [NP_pad, 1]  rowsum(pro_n) (used only on the folded path)
    out_refs: ([rows, T] pred(/assign), optional [NP_pad, T] bf16 dists)
    """
    out_ref = out_refs[0]
    dists_ref = out_refs[1] if want_dists else None

    qry = qry_ref[...]                                   # [C, T] f32
    pron = pron_ref[...]                                 # [NP, C] bf16
    c = qry.shape[0]

    if fold_qn:
        # Fold centering/safe-norm into the [NP, T] domain so the MXU consumes the
        # input block directly (no [C,T] qry_n temporary):
        #   pro_n @ (q - m) = pro_n @ q - rowsum(pro_n) * m
        mean = jnp.sum(qry, axis=0, keepdims=True) * (1.0 / c)          # [1, T]
        q2 = jnp.sum(qry * qry, axis=0, keepdims=True)                  # [1, T]
        var = jnp.maximum(q2 - c * mean * mean, 0.0)
        scale = 20.0 / jnp.maximum(jnp.sqrt(var), _EPS)                 # [1, T]
        raw = jnp.dot(pron, qry.astype(pron.dtype),
                      preferred_element_type=jnp.float32)               # [NP, T]
        dists = (raw - rsum_ref[...] * mean) * scale
    else:
        qc = qry - jnp.mean(qry, axis=0, keepdims=True)
        qn = jnp.sqrt(jnp.sum(qc * qc, axis=0, keepdims=True))
        qry_n = qc / jnp.maximum(qn, _EPS)
        dists = jnp.dot(pron, qry_n.astype(pron.dtype),
                        preferred_element_type=jnp.float32) * 20.0      # [NP, T]

    dists_m = dists + bias_ref[...]                      # mask rejected/padded rows
    m = jnp.max(dists_m, axis=0, keepdims=True)
    p = jnp.exp(dists_m - m)                             # rejected rows -> exactly 0
    denom = jnp.sum(p, axis=0, keepdims=True)
    # pred = sum_c qry_n*ch_proto*20 == sum_p softmax(dists)*dists (the reference's
    # ch_proto is a plain prob-weighted sum of pro_n rows, not re-normalized); the
    # softmax divide is fused into the final [1,T] row and done exactly.
    pred = jnp.sum(p * dists, axis=0, keepdims=True) / denom

    if want_assign:
        out_ref[0:1, :] = pred
        # argmax over prototypes, reusing the softmax max; emit the compacted index
        is_max = dists_m >= m
        out_ref[1:2, :] = jnp.min(
            jnp.where(is_max, rank_ref[...], jnp.float32(_RANK_SENTINEL)),
            axis=0, keepdims=True)
    else:
        out_ref[...] = pred

    if want_dists:
        dists_ref[...] = dists.astype(dists_ref.dtype)   # bf16, vis-only writeback


def _mask_kernel(pro_ref, qry_ref, out_ref):
    """'mask' mode: cosine(query pixel, mean prototype) * 20 for one HW tile.

    pro_ref: [C, 1], qry_ref: [C, T] -> out_ref: [1, T].  VPU broadcast-multiply +
    reduce (no M=1 MXU matmul); per-norm eps clamps match F.cosine_similarity.
    """
    pro = pro_ref[...]
    qry = qry_ref[...]
    dot = jnp.sum(pro * qry, axis=0, keepdims=True)               # [1, T]
    qn = jnp.sqrt(jnp.sum(qry * qry, axis=0, keepdims=True))      # [1, T]
    pn = jnp.sqrt(jnp.sum(pro * pro, axis=0, keepdims=True))      # [1, 1]
    out_ref[...] = dot / (jnp.maximum(qn, _EPS) * jnp.maximum(pn, _EPS)) * 20.0


# ---------------------------------------------------------------------------
# pallas_call wrappers
# ---------------------------------------------------------------------------
def _gridconv_core(qry_flat, pro_n, bias, rank, rsum, *, want_dists, want_assign):
    C, HW = qry_flat.shape
    NP_pad = pro_n.shape[0]
    tile, hw_pad, vmem_limit = _plan_tiling(HW, C, NP_pad, want_dists)
    if hw_pad != HW:
        # Only triggers when HW is not a multiple of 128; typical feature maps hit
        # the no-pad path (no extra HBM copy).
        qry_flat = jnp.pad(qry_flat, ((0, 0), (0, hw_pad - HW)))

    n_rows = 2 if want_assign else 1
    # NOTE: the grid-constant inputs below are fetched once by the pipeliner;
    # single-buffering them (pl.Buffered(1)) would save a little more VMEM on v7x
    # but is left off for portability.
    in_specs = [
        pl.BlockSpec((C, tile), lambda i: (0, i)),        # qry tile (pipelined)
        pl.BlockSpec((NP_pad, C), lambda i: (0, 0)),      # prototypes (constant)
        pl.BlockSpec((NP_pad, 1), lambda i: (0, 0)),      # bias (constant)
        pl.BlockSpec((NP_pad, 1), lambda i: (0, 0)),      # rank (constant)
        pl.BlockSpec((NP_pad, 1), lambda i: (0, 0)),      # rowsum(pro_n) (constant)
    ]
    if want_dists:
        out_specs = (pl.BlockSpec((n_rows, tile), lambda i: (0, i)),
                     pl.BlockSpec((NP_pad, tile), lambda i: (0, i)))
        out_shape = (jax.ShapeDtypeStruct((n_rows, hw_pad), jnp.float32),
                     jax.ShapeDtypeStruct((NP_pad, hw_pad), jnp.bfloat16))
    else:
        out_specs = pl.BlockSpec((n_rows, tile), lambda i: (0, i))
        out_shape = jax.ShapeDtypeStruct((n_rows, hw_pad), jnp.float32)

    kernel = functools.partial(_gridconv_kernel, fold_qn=NP_pad < C,
                               want_dists=want_dists, want_assign=want_assign)
    outs = pl.pallas_call(
        kernel,
        grid=(hw_pad // tile,),
        in_specs=in_specs,
        out_specs=out_specs,
        out_shape=out_shape,
        compiler_params=pltpu.CompilerParams(
            dimension_semantics=("parallel",),
            vmem_limit_bytes=vmem_limit),
    )(qry_flat, pro_n, bias, rank, rsum)

    if want_dists:
        return outs[0][:, :HW], outs[1][:, :HW]
    return outs[:, :HW], None


def _mask_core(qry_flat, proto_col):
    C, HW = qry_flat.shape
    tile, hw_pad, vmem_limit = _plan_tiling(HW, C, 0, False)
    if hw_pad != HW:
        qry_flat = jnp.pad(qry_flat, ((0, 0), (0, hw_pad - HW)))

    pred = pl.pallas_call(
        _mask_kernel,
        grid=(hw_pad // tile,),
        in_specs=[pl.BlockSpec((C, 1), lambda i: (0, 0)),
                  pl.BlockSpec((C, tile), lambda i: (0, i))],
        out_specs=pl.BlockSpec((1, tile), lambda i: (0, i)),
        out_shape=jax.ShapeDtypeStruct((1, hw_pad), jnp.float32),
        compiler_params=pltpu.CompilerParams(
            dimension_semantics=("parallel",),
            vmem_limit_bytes=vmem_limit),
    )(proto_col, qry_flat)
    return pred[:, :HW]


# ---------------------------------------------------------------------------
# Module
# ---------------------------------------------------------------------------
class MultiProtoAsWCos:
    """JAX/Pallas port of MultiProtoAsWCos (no learnable parameters).

    compute_dtype is the MXU operand dtype for the prototype/query correlation
    (bf16 default; accumulation is always f32).
    """

    def __init__(self, proto_grid, feature_hw, upsample_mode='bilinear',
                 compute_dtype=jnp.bfloat16):
        self.proto_grid = proto_grid
        self.upsample_mode = upsample_mode
        self.kernel_size = tuple(f // g for f, g in zip(feature_hw, proto_grid))
        self.compute_dtype = compute_dtype

    def forward(self, qry, sup_x, sup_y, mode, thresh, fg=True, isval=False,
                val_wsize=None, vis_sim=False, need_assign=True, **kwargs):
        # qry: [way(1), nb(1), C, H, W]; sup_x: [way, shot, nb, C, H, W]
        # sup_y: [way, shot, nb, H, W]
        # qry stays f32: an extra bf16 cast pass on the full query would add HBM
        # traffic when the producer emits f32 (feed bf16 upstream if available).
        qry = jnp.squeeze(qry, axis=1).astype(jnp.float32)                      # [1,C,H,W]
        sup_x = jnp.squeeze(jnp.squeeze(sup_x, axis=0), axis=1).astype(jnp.float32)  # [S,C,H,W]
        sup_y = jnp.squeeze(sup_y, axis=0).astype(jnp.float32)                  # [S,1,H,W]

        B, C, H, W = qry.shape
        HW = H * W

        if mode == 'mask':
            proto = jnp.sum(sup_x * sup_y, axis=(-1, -2)) / (
                jnp.sum(sup_y, axis=(-1, -2)) + 1e-5)                           # [S, C]
            proto_col = jnp.mean(proto, axis=0)[:, None]                        # [C, 1]
            pred = _mask_core(qry[0].reshape(C, HW), proto_col)
            pred_mask = pred.reshape(1, H, W)
            vis_dict = {'proto_assign': None}
            if vis_sim:
                vis_dict['raw_local_sims'] = pred_mask
            return pred_mask[:, None], [pred_mask], vis_dict

        elif mode in ('gridconv', 'gridconv+'):
            S = sup_x.shape[0]
            k = (val_wsize, val_wsize) if isval else self.kernel_size

            n_sup_x = _avg_pool2d(sup_x, k)                                     # [S,C,Hg,Wg]
            G = n_sup_x.shape[-2] * n_sup_x.shape[-1]
            cand = n_sup_x.reshape(S, C, G).transpose(0, 2, 1).reshape(S * G, C)
            sup_y_g = _avg_pool2d(sup_y, k).reshape(S * G)
            valid = sup_y_g > thresh                                            # on device

            if mode == 'gridconv+':
                glb = jnp.sum(sup_x * sup_y, axis=(-1, -2)) / (
                    jnp.sum(sup_y, axis=(-1, -2)) + 1e-5)                       # [S, C]
                cand = jnp.concatenate([cand, glb], axis=0)
                valid = jnp.concatenate([valid, jnp.ones((S,), jnp.bool_)], axis=0)

            NP_total = cand.shape[0]
            NP_pad = max(8, _round_up(NP_total, 8))

            # fixed-shape candidate list; rejected rows zeroed + masked via bias
            # (no host sync, no shape-dependent pallas recompiles)
            cand = jnp.where(valid[:, None], cand, 0.0)
            cand = jnp.pad(cand, ((0, NP_pad - NP_total), (0, 0)))
            valid_pad = jnp.pad(valid, (0, NP_pad - NP_total))

            # hoisted prototype centering + safe_norm (tiny [NP_pad, C])
            pro = cand - jnp.mean(cand, axis=1, keepdims=True)
            pn = jnp.sqrt(jnp.sum(pro * pro, axis=1, keepdims=True))
            pro_n = (pro / jnp.maximum(pn, _EPS)).astype(self.compute_dtype)    # bf16 MXU operand

            rsum = jnp.sum(pro_n.astype(jnp.float32), axis=1, keepdims=True)    # for folded path
            bias = jnp.where(valid_pad, 0.0, _NEG).astype(jnp.float32)[:, None]
            rank = jnp.where(valid_pad,
                             jnp.cumsum(valid_pad.astype(jnp.int32)) - 1,
                             0).astype(jnp.float32)[:, None]
            # NOTE: if no prototype passes `thresh` in 'gridconv' mode, pred is 0 and
            # assign is meaningless (the PyTorch reference would error in that case).

            out, dists = _gridconv_core(qry[0].reshape(C, HW), pro_n, bias, rank, rsum,
                                        want_dists=vis_sim, want_assign=need_assign)

            pred_grid = out[0].reshape(1, 1, H, W)
            debug_assign = out[1].reshape(1, H, W) if need_assign else None
            vis_dict = {'proto_assign': debug_assign}
            if vis_sim:
                # data-dependent-shape gather of the selected rows (vis-only path,
                # eager execution); cast the bf16 writeback back to f32 off hot path.
                dists_sel = dists[valid_pad].astype(jnp.float32)
                vis_dict['raw_local_sims'] = dists_sel.reshape(1, -1, H, W)
            return pred_grid, [debug_assign], vis_dict

        else:
            # TODO(synk): the reference 'else' branch uses self.conv1x1 which the
            # PyTorch module never defines (it would raise AttributeError there too).
            raise NotImplementedError("mode must be 'mask', 'gridconv' or 'gridconv+'")


# ---------------------------------------------------------------------------
# plain-JAX f32 reference (self-test only; mirrors the PyTorch math incl. the
# host boolean gather of selected prototypes)
# ---------------------------------------------------------------------------
def _ref_gridconv(qs, sx, sy, kernel, thresh, plus):
    C = qs.shape[1]
    H, W = qs.shape[-2:]
    S = sx.shape[0]
    n_sx = _avg_pool2d(sx, kernel)
    G = n_sx.shape[-2] * n_sx.shape[-1]
    cand = n_sx.reshape(S, C, G).transpose(0, 2, 1).reshape(S * G, C)
    syg = _avg_pool2d(sy, kernel).reshape(S * G)
    sel = np.asarray(syg) > thresh
    protos = jnp.asarray(np.asarray(cand)[sel])
    if plus:
        glb = jnp.sum(sx * sy, axis=(-1, -2)) / (jnp.sum(sy, axis=(-1, -2)) + 1e-5)
        protos = jnp.concatenate([protos, glb], axis=0)
    protos = protos - protos.mean(axis=-1, keepdims=True)
    pro_n = protos / jnp.maximum(
        jnp.sqrt(jnp.sum(protos ** 2, axis=1, keepdims=True)), _EPS)
    qc = qs[0] - qs[0].mean(axis=0, keepdims=True)
    qn = qc / jnp.maximum(jnp.sqrt(jnp.sum(qc ** 2, axis=0, keepdims=True)), _EPS)
    dists = pro_n @ qn.reshape(C, H * W) * 20.0
    prob = jax.nn.softmax(dists, axis=0)
    pred = jnp.sum(prob * dists, axis=0).reshape(1, 1, H, W)
    assign = jnp.argmax(dists, axis=0).astype(jnp.float32).reshape(1, H, W)
    return pred, assign, dists


# ---------------------------------------------------------------------------
# Demo / self-test
# ---------------------------------------------------------------------------
if __name__ == "__main__":
    key = jax.random.PRNGKey(0)
    way, shot, nb, C, H, W = 1, 2, 1, 32, 16, 16
    k1, k2, k3, k4, k5, k6 = jax.random.split(key, 6)

    qry = jax.random.normal(k1, (way, nb, C, H, W), jnp.float32)
    sup_x = jax.random.normal(k2, (way, shot, nb, C, H, W), jnp.float32)
    sup_y = (jax.random.uniform(k3, (way, shot, nb, H, W)) > 0.5).astype(jnp.float32)

    mod = MultiProtoAsWCos(proto_grid=(4, 4), feature_hw=(16, 16))

    pred_m, aux_m, vis_m = mod.forward(qry, sup_x, sup_y, mode='mask', thresh=0.3,
                                       vis_sim=True)
    pred_g, aux_g, vis_g = mod.forward(qry, sup_x, sup_y, mode='gridconv', thresh=0.3,
                                       vis_sim=True)
    pred_gp, aux_gp, vis_gp = mod.forward(qry, sup_x, sup_y, mode='gridconv+',
                                          thresh=0.3, vis_sim=True)
    # lean hot-path variant: no vis dists, no assign
    pred_lean, aux_lean, _ = mod.forward(qry, sup_x, sup_y, mode='gridconv+',
                                         thresh=0.3, vis_sim=False, need_assign=False)

    jax.block_until_ready((pred_m, pred_g, pred_gp, pred_lean, aux_g[0], aux_gp[0],
                           vis_g['raw_local_sims'], vis_gp['raw_local_sims']))

    # shape checks
    assert pred_m.shape == (1, 1, H, W)
    assert pred_g.shape == (1, 1, H, W)
    assert pred_gp.shape == (1, 1, H, W)
    assert pred_lean.shape == (1, 1, H, W)
    assert aux_g[0].shape == (1, H, W)
    assert aux_lean[0] is None
    assert vis_gp['raw_local_sims'].shape[0] == 1
    assert vis_gp['raw_local_sims'].shape[-2:] == (H, W)
    assert bool(jnp.all(jnp.isfinite(pred_g)))

    qs = jnp.squeeze(qry, axis=1)
    sx = jnp.squeeze(jnp.squeeze(sup_x, axis=0), axis=1)
    sy = jnp.squeeze(sup_y, axis=0)

    # mask mode (exact f32 path, per-norm clamps like F.cosine_similarity)
    proto_r = jnp.sum(sx * sy, axis=(-1, -2)) / (jnp.sum(sy, axis=(-1, -2)) + 1e-5)
    proto_r = proto_r.mean(axis=0)
    dot_r = jnp.einsum('c,chw->hw', proto_r, qs[0])
    qn_r = jnp.sqrt(jnp.sum(qs[0] ** 2, axis=0))
    pn_r = jnp.sqrt(jnp.sum(proto_r ** 2))
    ref_m = (dot_r / (jnp.maximum(qn_r, _EPS) * jnp.maximum(pn_r, _EPS)) * 20.0)[None, None]
    assert float(jnp.max(jnp.abs(pred_m - ref_m))) < 1e-2

    # gridconv / gridconv+ (bf16 MXU operands -> loose tolerance vs f32 reference)
    ref_p, ref_a, _ = _ref_gridconv(qs, sx, sy, mod.kernel_size, 0.3, plus=False)
    assert float(jnp.max(jnp.abs(pred_g - ref_p))) < 0.5
    assert float(jnp.mean((aux_g[0] == ref_a).astype(jnp.float32))) > 0.8

    ref_pp, ref_ap, _ = _ref_gridconv(qs, sx, sy, mod.kernel_size, 0.3, plus=True)
    assert float(jnp.max(jnp.abs(pred_gp - ref_pp))) < 0.5
    assert float(jnp.mean((aux_gp[0] == ref_ap).astype(jnp.float32))) > 0.8
    assert float(jnp.max(jnp.abs(pred_lean - pred_gp))) < 1e-4

    # second config: C > NP exercises the folded-normalization kernel path
    C2, H2, W2, shot2 = 256, 8, 8, 1
    qry2 = jax.random.normal(k4, (1, 1, C2, H2, W2), jnp.float32)
    sup_x2 = jax.random.normal(k5, (1, shot2, 1, C2, H2, W2), jnp.float32)
    sup_y2 = (jax.random.uniform(k6, (1, shot2, 1, H2, W2)) > 0.5).astype(jnp.float32)
    mod2 = MultiProtoAsWCos(proto_grid=(4, 4), feature_hw=(8, 8))
    pred2, aux2, _ = mod2.forward(qry2, sup_x2, sup_y2, mode='gridconv+', thresh=0.3,
                                  vis_sim=False)
    jax.block_until_ready(pred2)
    qs2 = jnp.squeeze(qry2, axis=1)
    sx2 = jnp.squeeze(jnp.squeeze(sup_x2, axis=0), axis=1)
    sy2 = jnp.squeeze(sup_y2, axis=0)
    ref_p2, ref_a2, _ = _ref_gridconv(qs2, sx2, sy2, mod2.kernel_size, 0.3, plus=True)
    assert pred2.shape == (1, 1, H2, W2)
    assert float(jnp.max(jnp.abs(pred2 - ref_p2))) < 0.5
    assert float(jnp.mean((aux2[0] == ref_a2).astype(jnp.float32))) > 0.8

    print("KERNEL_OK")
</pallas_src>

<mosaic_0001>
module attributes {stable_mosaic.version = 11 : i64} {
  func.func @_mask_kernel(%arg0: i32, %arg1: memref<32x1xf32, #tpu.memory_space<vmem>>, %arg2: memref<32x128xf32, #tpu.memory_space<vmem>>, %arg3: memref<1x128xf32, #tpu.memory_space<vmem>>) attributes {dimension_semantics = [#tpu.dimension_semantics<parallel>], iteration_bounds = array<i64: 2>, scalar_prefetch = 0 : i64, scratch_operands = 0 : i64, tpu.core_type = #tpu.core_type<tc>, window_params = [{pipeline_mode = #tpu.pipeline_mode<synchronous>, transform_indices = @transform_0, window_bounds = array<i64: 32, 1>}, {transform_indices = @transform_1, window_bounds = array<i64: 32, 128>}, {transform_indices = @transform_2, window_bounds = array<i64: 1, 128>}]} {
    %c0 = arith.constant 0 : index
    %c0_0 = arith.constant 0 : index
    %0 = vector.load %arg1[%c0, %c0_0] : memref<32x1xf32, #tpu.memory_space<vmem>>, vector<32x1xf32>
    %c0_1 = arith.constant 0 : index
    %c0_2 = arith.constant 0 : index
    %1 = vector.load %arg2[%c0_1, %c0_2] : memref<32x128xf32, #tpu.memory_space<vmem>>, vector<32x128xf32>
    %2 = vector.broadcast %0 : vector<32x1xf32> to vector<32x128xf32>
    %3 = arith.mulf %2, %1 : vector<32x128xf32>
    %cst = arith.constant dense<0.000000e+00> : vector<128xf32>
    %4 = vector.multi_reduction <add>, %3, %cst [0] : vector<32x128xf32> to vector<128xf32>
    %5 = vector.shape_cast %4 : vector<128xf32> to vector<1x128xf32>
    %6 = arith.mulf %1, %1 : vector<32x128xf32>
    %cst_3 = arith.constant dense<0.000000e+00> : vector<128xf32>
    %7 = vector.multi_reduction <add>, %6, %cst_3 [0] : vector<32x128xf32> to vector<128xf32>
    %8 = vector.shape_cast %7 : vector<128xf32> to vector<1x128xf32>
    %9 = math.sqrt %8 : vector<1x128xf32>
    %10 = arith.mulf %0, %0 : vector<32x1xf32>
    %cst_4 = arith.constant dense<0.000000e+00> : vector<1xf32>
    %11 = vector.multi_reduction <add>, %10, %cst_4 [0] : vector<32x1xf32> to vector<1xf32>
    %12 = vector.shape_cast %11 : vector<1xf32> to vector<1x1xf32>
    %13 = math.sqrt %12 : vector<1x1xf32>
    %cst_5 = arith.constant 9.99999974E-5 : f32
    %14 = vector.broadcast %cst_5 : f32 to vector<1x128xf32>
    %15 = arith.maximumf %9, %14 : vector<1x128xf32>
    %cst_6 = arith.constant 9.99999974E-5 : f32
    %16 = vector.broadcast %cst_6 : f32 to vector<1x1xf32>
    %17 = arith.maximumf %13, %16 : vector<1x1xf32>
    %18 = vector.broadcast %17 : vector<1x1xf32> to vector<1x128xf32>
    %19 = arith.mulf %15, %18 : vector<1x128xf32>
    %20 = arith.divf %5, %19 : vector<1x128xf32>
    %cst_7 = arith.constant 2.000000e+01 : f32
    %21 = vector.broadcast %cst_7 : f32 to vector<1x128xf32>
    %22 = arith.mulf %20, %21 : vector<1x128xf32>
    %c0_8 = arith.constant 0 : index
    %c0_9 = arith.constant 0 : index
    %23 = vector.load %arg3[%c0_8, %c0_9] : memref<1x128xf32, #tpu.memory_space<vmem>>, vector<1x128xf32>
    tpu.vector_store %arg3[%c0_8, %c0_9], %22 {strides = array<i32>} : memref<1x128xf32, #tpu.memory_space<vmem>>, vector<1x128xf32>,
    return
  }
  func.func @transform_0(%arg0: i32) -> (i32, i32) {
    %c0_i32 = arith.constant 0 : i32
    %c0_i32_0 = arith.constant 0 : i32
    %c0_i32_1 = arith.constant 0 : i32
    return %c0_i32, %c0_i32_0 : i32, i32
  }
  func.func @transform_1(%arg0: i32) -> (i32, i32) {
    %c0_i32 = arith.constant 0 : i32
    %c0_i32_0 = arith.constant 0 : i32
    return %c0_i32, %arg0 : i32, i32
  }
  func.func @transform_2(%arg0: i32) -> (i32, i32) {
    %c0_i32 = arith.constant 0 : i32
    %c0_i32_0 = arith.constant 0 : i32
    return %c0_i32, %arg0 : i32, i32
  }
}

</mosaic_0001>

<llo_original>
// kernel: tpu_custom_call.1
$region0: #{tpu_custom_call.1}
  #allocation0 [shape = 'u32[]', space=smem, size = 0x4, offset = 0x4, fixed_abs, tag = 'smem constant byte address 0x4 - core index']
  #allocation1 [shape = 'u32[144,128]{1,0:T(1,128)}', space=vmem, size = 0x12000, scoped, tag = 'internal scratch']
  %s0 = inlined_call_operand.vmem [shape: f32[32,1], index: 0, kind: input, shape index: {}]
  %s1 = inlined_call_operand.hbm [shape: f32[32,256], index: 1, kind: input, shape index: {}]
  %s2 = inlined_call_operand.hbm [shape: f32[1,256], index: 2, kind: output, shape index: {}]
  %s3 = sld [smem:[#allocation0]]
  $region45: #{tpu_custom_call.1} parent=0
    _
  %s5 = ssub.s32 1, %s3
  %s6 = scalar_select 0, %s5, %s3
  $region1: #{tpu_custom_call.1} parent=0
    #allocation2 [shape = 'u8[32768]{0}', space=vmem, size = 0x8000, scoped, tag = 'input window, operand 1']
    #allocation3 [shape = 's32[2]{0}', space=sflag, size = 0x8, scoped, tag = 'scoped memory for tpu_custom_call.1']
    #allocation4 [shape = 's32[2]{0}', space=sflag, size = 0x8, scoped, tag = 'scoped memory for tpu_custom_call.1']
    #allocation5 [shape = 'u8[1024]{0}', space=vmem, size = 0x400, scoped, tag = 'output window, operand 0']
    %7 = vsyncpa [#allocation3], 0
    %s8 = scalar_lea.sflag [#allocation3], 1
    %9 = vsyncpa %s8, 0
    %10 = vsyncpa [#allocation4], 0
    %s11 = scalar_lea.sflag [#allocation4], 1
    %12 = vsyncpa %s11, 0
    loop: start=0, step=1, limit=4
    $region2: #{tpu_custom_call.1} parent=1 // loop_pre_header
      _
    $region3: #{tpu_custom_call.1} parent=1 // loop_header
      %s14 = sphi 0, %s18
      %p15 = scmp.ge.s32.totalorder %s14, 4
      %s22 = sphi 0, %s22
      %s24 = sphi 0, %s22
      %s25 = sphi 0, %s24
      %s39 = sphi 0, %s25
      %s45 = sphi 0, %s47
      %s48 = sphi 0, %s45
      %s49 = sphi 0, %s48
      %s65 = sphi 0, %s49
      %s71 = sphi 0, %s73
      %s74 = sphi 0, %s71
      %s75 = sphi 0, %s74
      %s91 = sphi 0, %s75
    $region4: #{tpu_custom_call.1} parent=1 // loop_header_branch
      %17 = sbr.rel (%p15) target = $region8
    $region5: #{tpu_custom_call.1} parent=1 // loop_body
      %s19 = ssub.s32 %s14, 1
      %s20 = ssub.s32 %s14, 2
      %s21 = sadd.s32 %s14, 1
      %s23 = sadd.s32 %s22, 1
      %p26 = scmp.eq.s32.totalorder %s14, 1
      %p27 = scmp.ne.s32.totalorder %s22, %s24
      %p28 = scmp.eq.s32.totalorder %s14, 0
      %p29 = por %p27, %p28
      %p30 = scmp.ne.s32.totalorder %s22, %s24
      %p31 = scmp.eq.s32.totalorder %s19, 1
      %p32 = por %p30, %p31
      %p33 = scmp.ne.s32.totalorder %s24, %s25
      %p34 = scmp.eq.s32.totalorder %s19, 0
      %p35 = por %p33, %p34
      %p36 = scmp.ne.s32.totalorder %s24, %s25
      %p37 = scmp.eq.s32.totalorder %s20, 1
      %p38 = por %p36, %p37
      %p40 = scmp.ne.s32.totalorder %s25, %s39
      %p41 = scmp.eq.s32.totalorder %s20, 0
      %p42 = por %p40, %p41
      %s43 = ssub.s32 %s14, %s21
      %p44 = scmp.eq.s32.totalorder %s43, 0
      %s46 = sadd.s32 %s45, 1
      %s47 = scalar_select %p44, %s45, %s46
      %p50 = pneg %p44
      %p51 = scmp.eq.s32.totalorder %s14, 1
      %p52 = por %p50, %p51
      %p53 = scmp.ne.s32.totalorder %s45, %s48
      %p54 = scmp.eq.s32.totalorder %s14, 0
      %p55 = por %p53, %p54
      %p56 = scmp.ne.s32.totalorder %s45, %s48
      %p57 = scmp.eq.s32.totalorder %s19, 1
      %p58 = por %p56, %p57
      %p59 = scmp.ne.s32.totalorder %s48, %s49
      %p60 = scmp.eq.s32.totalorder %s19, 0
      %p61 = por %p59, %p60
      %p62 = scmp.ne.s32.totalorder %s48, %s49
      %p63 = scmp.eq.s32.totalorder %s20, 1
      %p64 = por %p62, %p63
      %p66 = scmp.ne.s32.totalorder %s49, %s65
      %p67 = scmp.eq.s32.totalorder %s20, 0
      %p68 = por %p66, %p67
      %s69 = ssub.s32 %s14, %s21
      %p70 = scmp.eq.s32.totalorder %s69, 0
      %s72 = sadd.s32 %s71, 1
      %s73 = scalar_select %p70, %s71, %s72
      %p76 = pneg %p70
      %p77 = scmp.eq.s32.totalorder %s14, 1
      %p78 = por %p76, %p77
      %p79 = scmp.ne.s32.totalorder %s71, %s74
      %p80 = scmp.eq.s32.totalorder %s14, 0
      %p81 = por %p79, %p80
      %p82 = scmp.ne.s32.totalorder %s71, %s74
      %p83 = scmp.eq.s32.totalorder %s19, 1
      %p84 = por %p82, %p83
      %p85 = scmp.ne.s32.totalorder %s74, %s75
      %p86 = scmp.eq.s32.totalorder %s19, 0
      %p87 = por %p85, %p86
      %p88 = scmp.ne.s32.totalorder %s74, %s75
      %p89 = scmp.eq.s32.totalorder %s20, 1
      %p90 = por %p88, %p89
      %p92 = scmp.ne.s32.totalorder %s75, %s91
      %p93 = scmp.eq.s32.totalorder %s20, 0
      %p94 = por %p92, %p93
      %p95 = scmp.le.s32.totalorder 1, %s14
      %p96 = scmp.lt.s32.totalorder %s14, 3
      %p97 = pnand %p95, %p96
      %p98 = pneg %p97
      // Predicated region
      $region9: #{tpu_custom_call.1} parent=5 // pred_check
        _
      $region10: #{tpu_custom_call.1} parent=5 // pred_check_branch
        %100 = sbr.rel (%p97) target = $region12
      $region11: #{tpu_custom_call.1} parent=5 // pred_region
        %s101 = ssub.s32 %s14, 1
        // Predicated region
        $region13: #{tpu_custom_call.1} parent=11 // pred_check
          %p102 = pneg %p35
        $region14: #{tpu_custom_call.1} parent=11 // pred_check_branch
          %104 = sbr.rel (%p102) target = $region16
        $region15: #{tpu_custom_call.1} parent=11 // pred_region
          _
        $region16: #{tpu_custom_call.1} parent=11 // pred_fallthru
          _
      $region12: #{tpu_custom_call.1} parent=5 // pred_fallthru
        _
      %p105 = scmp.lt.s32.totalorder %s14, 2
      // Predicated region
      $region17: #{tpu_custom_call.1} parent=5 // pred_check
        %p106 = pneg %p105
      $region18: #{tpu_custom_call.1} parent=5 // pred_check_branch
        %108 = sbr.rel (%p106) target = $region20
      $region19: #{tpu_custom_call.1} parent=5 // pred_region
        // Predicated region
        $region21: #{tpu_custom_call.1} parent=19 // pred_check
          %p109 = pneg %p55
        $region22: #{tpu_custom_call.1} parent=19 // pred_check_branch
          %111 = sbr.rel (%p109) target = $region24
        $region23: #{tpu_custom_call.1} parent=19 // pred_region
          %s112 = sand.u32 %s45, 1
          %s113 = scalar_lea.sflag [#allocation3], %s112
          %s114 = sand.u32 %s45, 1
          %s115 = smul.addr %s114, 32
          %s116 = scalar_lea.vmem [#allocation2], %s115
          %s118 = ssub.s32 512, 512
          %119 = vsyncadd %s113, %s118
          %s120 = smul.addr %s14, 128
          %s121 = scalar_lea.hbm %s1, %s120
          %s122 = sshll.u32 %s116, 4
          %s123 = int_to_ptr.vmem [resolvable:$true] %s122
          %128 = dma.hbm_to_vmem [thread:$0]  %s121, 512, %s123, %s113, 256, 128, 8
        $region24: #{tpu_custom_call.1} parent=19 // pred_fallthru
          _
      $region20: #{tpu_custom_call.1} parent=5 // pred_fallthru
        _
      %p129 = scmp.le.s32.totalorder 1, %s14
      %p130 = scmp.lt.s32.totalorder %s14, 3
      %p131 = pnand %p129, %p130
      %p132 = pneg %p131
      // Predicated region
      $region25: #{tpu_custom_call.1} parent=5 // pred_check
        _
      $region26: #{tpu_custom_call.1} parent=5 // pred_check_branch
        %134 = sbr.rel (%p131) target = $region28
      $region27: #{tpu_custom_call.1} parent=5 // pred_region
        %s135 = ssub.s32 %s14, 1
        %s136 = sand.u32 %s48, 1
        %s137 = scalar_lea.sflag [#allocation3], %s136
        %s138 = sand.u32 %s48, 1
        %s139 = smul.addr %s138, 32
        %s140 = scalar_lea.vmem [#allocation2], %s139
        // Predicated region
        $region29: #{tpu_custom_call.1} parent=27 // pred_check
          %p141 = pneg %p61
        $region30: #{tpu_custom_call.1} parent=27 // pred_check_branch
          %143 = sbr.rel (%p141) target = $region32
        $region31: #{tpu_custom_call.1} parent=27 // pred_region
          %144 = dma.done %s137, 512
        $region32: #{tpu_custom_call.1} parent=27 // pred_fallthru
          _
        %p145 = pneg %p35
        %p146 = pneg %p32
        %s147 = sand.u32 %s48, 1
        %s148 = scalar_lea.sflag [#allocation3], %s147
        %s149 = sand.u32 %s48, 1
        %s150 = smul.addr %s149, 32
        %s151 = scalar_lea.vmem [#allocation2], %s150
        %p152 = pneg %p61
        %p153 = pneg %p58
        %p154 = pneg %p87
        %p155 = pneg %p84
        %s156 = sand.u32 %s74, 1
        %s157 = scalar_lea.sflag [#allocation4], %s156
        %s158 = sand.u32 %s74, 1
        %s159 = scalar_lea.vmem [#allocation5], %s158
        %v160 = vld [vmem:[%s0] sm:$0xff]
        %v161 = vld [vmem:[%s0 + $0x8] sm:$0xff]
        %v162 = vld [vmem:[%s0 + $0x10] sm:$0xff]
        %v163 = vld [vmem:[%s0 + $0x18] sm:$0xff]
        %v164 = vld [vmem:[%s140] sm:$0xff]
        %v165 = vld [vmem:[%s140 + $0x8] sm:$0xff]
        %v166 = vld [vmem:[%s140 + $0x10] sm:$0xff]
        %v167 = vld [vmem:[%s140 + $0x18] sm:$0xff]
        %169 = vset.pattern.permute.xlu0 0
        %170 = vperm.xlu0 %169, %v160
        %v171 = vpop.permute.xlu0 %170
        %174 = vset.pattern.permute.xlu0 0
        %175 = vperm.xlu0 %174, %v161
        %v176 = vpop.permute.xlu0 %175
        %179 = vset.pattern.permute.xlu0 0
        %180 = vperm.xlu0 %179, %v162
        %v181 = vpop.permute.xlu0 %180
        %184 = vset.pattern.permute.xlu0 0
        %185 = vperm.xlu0 %184, %v163
        %v186 = vpop.permute.xlu0 %185
        %v188 = vmul.f32 %v171, %v164
        %v189 = vmul.f32 %v176, %v165
        %v190 = vmul.f32 %v181, %v166
        %v191 = vmul.f32 %v186, %v167
        %v192 = vadd.f32 %v188, %v189
        %v193 = vadd.f32 %v192, %v190
        %v194 = vadd.f32 %v193, %v191
        %v195 = vrot.slane %v194, 4
        %v196 = vadd.f32 %v194, %v195
        %v197 = vrot.slane %v196, 2
        %v198 = vadd.f32 %v196, %v197
        %v199 = vrot.slane %v198, 1
        %v200 = vadd.f32 %v198, %v199
        %v201 = vmul.f32 %v164, %v164
        %v202 = vmul.f32 %v165, %v165
        %v203 = vmul.f32 %v166, %v166
        %v204 = vmul.f32 %v167, %v167
        %v205 = vadd.f32 %v201, %v202
        %v206 = vadd.f32 %v205, %v203
        %v207 = vadd.f32 %v206, %v204
        %v208 = vrot.slane %v207, 4
        %v209 = vadd.f32 %v207, %v208
        %v210 = vrot.slane %v209, 2
        %v211 = vadd.f32 %v209, %v210
        %v212 = vrot.slane %v211, 1
        %v213 = vadd.f32 %v211, %v212
        %v214 = vrsqrt.pop %v213
        %v215 = vmul.f32 %v213, %v214
        %vm216 = vcmp.eq.f32.partialorder %v213, inf
        %v217 = vsel %vm216, %v213, %v215
        %vm218 = vcmp.eq.f32.partialorder %v213, 0.0
        %v219 = vand.u32 %v213, 2147483648
        %v220 = vsel %vm218, %v219, %v217
        %v221 = vmul.f32 %v160, %v160
        %v222 = vmul.f32 %v161, %v161
        %v223 = vmul.f32 %v162, %v162
        %v224 = vmul.f32 %v163, %v163
        %vm225 = vcmask 7168
        %v226 = vsel %vm225, %v221, 0.0
        %v227 = vsel %vm225, %v222, 0.0
        %v228 = vadd.f32 %v226, %v227
        %v229 = vsel %vm225, %v223, 0.0
        %v230 = vadd.f32 %v228, %v229
        %v231 = vsel %vm225, %v224, 0.0
        %v232 = vadd.f32 %v230, %v231
        %v233 = vrot.slane %v232, 4
        %v234 = vadd.f32 %v232, %v233
        %v235 = vrot.slane %v234, 2
        %v236 = vadd.f32 %v234, %v235
        %v237 = vrot.slane %v236, 1
        %v238 = vadd.f32 %v236, %v237
        %v239 = vrsqrt.pop %v238
        %v240 = vmul.f32 %v238, %v239
        %vm241 = vcmp.eq.f32.partialorder %v238, inf
        %v242 = vsel %vm241, %v238, %v240
        %vm243 = vcmp.eq.f32.partialorder %v238, 0.0
        %v244 = vand.u32 %v238, 2147483648
        %v245 = vsel %vm243, %v244, %v242
        %v246 = vmax.f32 %v220, 0.0001
        %v247 = vmax.f32 %v245, 0.0001
        %249 = vset.pattern.permute.xlu0 0
        %250 = vperm.xlu0 %249, %v247
        %v251 = vpop.permute.xlu0 %250
        %v253 = vmul.f32 %v246, %v251
        %v254 = vrcp.pop %v253
        %v255 = vmul.f32 %v200, %v254
        %v256 = vmul.f32 %v255, 20.0
        %257 = vst [vmem:[%s159] sm:$0x1] %v256
        %s258 = sand.u32 %s74, 1
        %s259 = scalar_lea.sflag [#allocation4], %s258
        %s260 = sand.u32 %s74, 1
        %s261 = scalar_lea.vmem [#allocation5], %s260
        // Predicated region
        $region33: #{tpu_custom_call.1} parent=27 // pred_check
          %p262 = pneg %p84
        $region34: #{tpu_custom_call.1} parent=27 // pred_check_branch
          %264 = sbr.rel (%p262) target = $region36
        $region35: #{tpu_custom_call.1} parent=27 // pred_region
          %s266 = ssub.s32 16, 16
          %267 = vsyncadd %s259, %s266
          %s268 = smul.addr %s19, 16
          %s269 = scalar_lea.hbm %s2, %s268
          %s271 = sshll.u32 %s261, 4
          %s272 = int_to_ptr.vmem [resolvable:$true] %s271
          %274 = dma.vmem_to_hbm [thread:$0]  %s272, 16, %s269, %s259
        $region36: #{tpu_custom_call.1} parent=27 // pred_fallthru
          _
      $region28: #{tpu_custom_call.1} parent=5 // pred_fallthru
        _
      %p275 = scmp.le.s32.totalorder 2, %s14
      // Predicated region
      $region37: #{tpu_custom_call.1} parent=5 // pred_check
        %p276 = pneg %p275
      $region38: #{tpu_custom_call.1} parent=5 // pred_check_branch
        %278 = sbr.rel (%p276) target = $region40
      $region39: #{tpu_custom_call.1} parent=5 // pred_region
        %s279 = ssub.s32 %s14, 2
        // Predicated region
        $region41: #{tpu_custom_call.1} parent=39 // pred_check
          %p280 = pneg %p90
        $region42: #{tpu_custom_call.1} parent=39 // pred_check_branch
          %282 = sbr.rel (%p280) target = $region44
        $region43: #{tpu_custom_call.1} parent=39 // pred_region
          %s283 = sand.u32 %s75, 1
          %s284 = scalar_lea.sflag [#allocation4], %s283
          %s285 = sand.u32 %s75, 1
          %s286 = scalar_lea.vmem [#allocation5], %s285
          %287 = dma.done %s284, 16
        $region44: #{tpu_custom_call.1} parent=39 // pred_fallthru
          _
      $region40: #{tpu_custom_call.1} parent=5 // pred_fallthru
        _
    $region6: #{tpu_custom_call.1} parent=1 // loop_footer
      %s18 = sadd.s32 1, %s14
    $region7: #{tpu_custom_call.1} parent=1 // loop_footer_branch
      %13 = sbr.rel target = $region3
    $region8: #{tpu_custom_call.1} parent=1 // loop_exit
      _
    %288 = vsyncpa [#allocation3], 1
    %s289 = scalar_lea.sflag [#allocation3], 1
    %290 = vsyncpa %s289, 1
    %291 = vsyncpa [#allocation4], 1
    %s292 = scalar_lea.sflag [#allocation4], 1
    %293 = vsyncpa %s292, 1

</llo_original>
